<compile_context>
chip_gen: v6e
topology: v6e:2x2x1
jax: 0.10.0
libtpu: 0.0.40
codegen_flags: <defaults>
</compile_context>

<pallas_src>
import functools

import jax
import jax.numpy as jnp
from jax.experimental import pallas as pl
from jax.experimental.pallas import tpu as pltpu


# ---------------------------------------------------------------------------
# Kernel: pointwise (k=1) Conv1d + ReLU on an (B, C, tile_n) NCW slab.
# ---------------------------------------------------------------------------
def pointwise_conv_relu_kernel(x_ref, w_ref, b_ref, out_ref):
    # x_ref:   (B, C_in, tile_n)   -- N on the 128-lane axis (lane-dense)
    # w_ref:   (C_out, C_in)
    # b_ref:   (C_out, 1)
    # out_ref: (B, C_out, tile_n)  -- NCW, lane-dense unmasked stores
    w = w_ref[...]
    b = b_ref[...]
    n_batch = x_ref.shape[0]
    # Static unroll over the (small, folded-in) batch: each step is a plain
    # (C_out, C_in) @ (C_in, tile_n) MXU matmul with f32 accumulation.
    for bi in range(n_batch):
        acc = jnp.dot(w, x_ref[bi], preferred_element_type=jnp.float32)
        acc = acc + b                                 # bias broadcast over lanes
        out_ref[bi] = jnp.maximum(acc, 0.0).astype(out_ref.dtype)   # ReLU


# ---------------------------------------------------------------------------
# Tile-size selection: as big as possible (HBM roofline) but keep >= 2 grid
# steps so both TensorCores on v7x get work.
# ---------------------------------------------------------------------------
def _choose_tile_n(n, requested):
    assert n % 128 == 0, f"spatial length N={n} must be a multiple of 128"
    if requested is not None:
        assert requested % 128 == 0 and n % requested == 0, (
            "tile_n must be a multiple of 128 that divides N")
        return requested
    target = min(2048, max(128, n // 2))   # prefer 1-2K lanes, >=2 steps
    t = target - (target % 128)
    while t > 128 and n % t != 0:
        t -= 128
    if n % t != 0:
        t = 128
    return t


# ---------------------------------------------------------------------------
# Wrapper: NonCNN.forward (minus the host-side debug prints).
# ---------------------------------------------------------------------------
def non_cnn_forward(x_ncw, weight, bias, *, tile_n=None, out_dtype=jnp.float32,
                    force_pallas=False):
    """x_ncw: (B, C_in, N); weight: (C_out, C_in) or (C_out, C_in, 1);
    bias: (C_out,) or (C_out, 1).  Returns (B, C_out, N) in `out_dtype`,
    matching PyTorch Conv1d(k=1)+ReLU output layout."""
    # TODO(synk): the PyTorch forward print()s input_channels / size / tensor;
    # host-side prints have no Pallas equivalent and are omitted.
    B, C_in, N = x_ncw.shape
    if weight.ndim == 3:                       # PyTorch Conv1d weight (O, I, 1)
        assert weight.shape[-1] == 1
        weight = weight[..., 0]
    C_out = weight.shape[0]
    assert weight.shape == (C_out, C_in)
    bias = jnp.reshape(bias, (C_out, 1))       # accept (C_out,) or (C_out, 1)

    # Tiny-problem dispatch: pallas launch + grid-step overhead exceeds the
    # useful work below ~1 MiB of total HBM traffic; XLA's fused einsum wins.
    total_bytes = 4 * (x_ncw.size + B * C_out * N + weight.size + bias.size)
    if total_bytes < (1 << 20) and not force_pallas:
        y = jnp.einsum("oc,bcn->bon", weight, x_ncw,
                       preferred_element_type=jnp.float32) + bias[None]
        return jax.nn.relu(y).astype(out_dtype)

    tile_n = _choose_tile_n(N, tile_n)
    grid = (N // tile_n,)

    # VMEM budget guard (v7x scoped default is 32 MiB): double-buffered input
    # + output slabs plus the resident weight/bias.
    vmem_bytes = (2 * 4 * B * (C_in + C_out) * tile_n
                  + 2 * 4 * (C_out * C_in + C_out))
    assert vmem_bytes <= 24 * 1024 * 1024, (
        f"blocks need ~{vmem_bytes/2**20:.1f} MiB VMEM; shrink tile_n "
        f"(={tile_n}) or put the batch back on the grid")

    return pl.pallas_call(
        pointwise_conv_relu_kernel,
        out_shape=jax.ShapeDtypeStruct((B, C_out, N), out_dtype),
        grid=grid,
        in_specs=[
            pl.BlockSpec((B, C_in, tile_n), lambda n: (0, 0, n)),
            pl.BlockSpec((C_out, C_in),     lambda n: (0, 0)),
            pl.BlockSpec((C_out, 1),        lambda n: (0, 0)),
        ],
        out_specs=pl.BlockSpec((B, C_out, tile_n), lambda n: (0, 0, n)),
        compiler_params=pltpu.CompilerParams(
            dimension_semantics=("parallel",)),
    )(x_ncw, weight, bias)


# ---------------------------------------------------------------------------
# Pure-JAX reference for correctness checking.
# ---------------------------------------------------------------------------
def reference_forward(x_ncw, weight, bias):
    hp = jax.lax.Precision.HIGHEST
    bias = jnp.reshape(bias, (weight.shape[0], 1))
    y = jnp.einsum("oc,bcn->bon", weight, x_ncw, precision=hp) + bias[None]
    return jax.nn.relu(y)


if __name__ == "__main__":
    # Small shapes consistent with the module: batch=2, input_channels=4,
    # output_channels=64, spatial length N=512.
    # Auto tile_n -> 256 (2 lane-dense grid steps, both TCs busy on v7x).
    B, C_IN, C_OUT, N = 2, 4, 64, 512
    key = jax.random.PRNGKey(0)
    kx, kw, kb = jax.random.split(key, 3)

    x = jax.random.normal(kx, (B, C_IN, N), jnp.float32)
    weight = jax.random.normal(kw, (C_OUT, C_IN), jnp.float32) / jnp.sqrt(float(C_IN))
    bias = 0.01 * jax.random.normal(kb, (C_OUT,), jnp.float32)

    fwd = jax.jit(functools.partial(non_cnn_forward, force_pallas=True))
    out = jax.block_until_ready(fwd(x, weight, bias))

    ref = reference_forward(x, weight, bias)
    assert out.shape == (B, C_OUT, N)
    assert out.dtype == jnp.float32
    assert bool(jnp.all(jnp.isfinite(out)))
    assert bool(jnp.allclose(out, ref, rtol=1e-5, atol=1e-5))
    print("KERNEL_OK")
</pallas_src>

<mosaic_0001>
module attributes {stable_mosaic.version = 11 : i64} {
  func.func @pointwise_conv_relu_kernel(%arg0: i32, %arg1: memref<2x4x256xf32, #tpu.memory_space<vmem>>, %arg2: memref<64x4xf32, #tpu.memory_space<vmem>>, %arg3: memref<64x1xf32, #tpu.memory_space<vmem>>, %arg4: memref<2x64x256xf32, #tpu.memory_space<vmem>>) attributes {dimension_semantics = [#tpu.dimension_semantics<parallel>], iteration_bounds = array<i64: 2>, scalar_prefetch = 0 : i64, scratch_operands = 0 : i64, tpu.core_type = #tpu.core_type<tc>, window_params = [{transform_indices = @transform_0, window_bounds = array<i64: 2, 4, 256>}, {pipeline_mode = #tpu.pipeline_mode<synchronous>, transform_indices = @transform_1, window_bounds = array<i64: 64, 4>}, {pipeline_mode = #tpu.pipeline_mode<synchronous>, transform_indices = @transform_2, window_bounds = array<i64: 64, 1>}, {transform_indices = @transform_3, window_bounds = array<i64: 2, 64, 256>}]} {
    %c0 = arith.constant 0 : index
    %c0_0 = arith.constant 0 : index
    %0 = vector.load %arg2[%c0, %c0_0] : memref<64x4xf32, #tpu.memory_space<vmem>>, vector<64x4xf32>
    %c0_1 = arith.constant 0 : index
    %c0_2 = arith.constant 0 : index
    %1 = vector.load %arg3[%c0_1, %c0_2] : memref<64x1xf32, #tpu.memory_space<vmem>>, vector<64x1xf32>
    %c0_3 = arith.constant 0 : index
    %c0_4 = arith.constant 0 : index
    %c0_5 = arith.constant 0 : index
    %2 = vector.load %arg1[%c0_3, %c0_4, %c0_5] : memref<2x4x256xf32, #tpu.memory_space<vmem>>, vector<1x4x256xf32>
    %3 = vector.shape_cast %2 : vector<1x4x256xf32> to vector<4x256xf32>
    %cst = arith.constant dense<0.000000e+00> : vector<64x256xf32>
    %4 = tpu.matmul %0, %3, %cst {dimension_numbers = #tpu.dot_dimension_numbers<[1], [0], [0], [1], [0, 0, 1, 1], [], []>} : vector<64x4xf32>, vector<4x256xf32>, vector<64x256xf32> -> vector<64x256xf32>
    %5 = vector.broadcast %1 : vector<64x1xf32> to vector<64x256xf32>
    %6 = arith.addf %4, %5 : vector<64x256xf32>
    %cst_6 = arith.constant 0.000000e+00 : f32
    %7 = vector.broadcast %cst_6 : f32 to vector<64x256xf32>
    %8 = arith.maximumf %6, %7 : vector<64x256xf32>
    %c0_7 = arith.constant 0 : index
    %c0_8 = arith.constant 0 : index
    %c0_9 = arith.constant 0 : index
    %9 = vector.load %arg4[%c0_7, %c0_8, %c0_9] : memref<2x64x256xf32, #tpu.memory_space<vmem>>, vector<1x64x256xf32>
    %10 = vector.shape_cast %9 : vector<1x64x256xf32> to vector<64x256xf32>
    %11 = vector.shape_cast %8 : vector<64x256xf32> to vector<1x64x256xf32>
    tpu.vector_store %arg4[%c0_7, %c0_8, %c0_9], %11 {strides = array<i32>} : memref<2x64x256xf32, #tpu.memory_space<vmem>>, vector<1x64x256xf32>,
    %c1 = arith.constant 1 : index
    %c0_10 = arith.constant 0 : index
    %c0_11 = arith.constant 0 : index
    %12 = vector.load %arg1[%c1, %c0_10, %c0_11] : memref<2x4x256xf32, #tpu.memory_space<vmem>>, vector<1x4x256xf32>
    %13 = vector.shape_cast %12 : vector<1x4x256xf32> to vector<4x256xf32>
    %cst_12 = arith.constant dense<0.000000e+00> : vector<64x256xf32>
    %14 = tpu.matmul %0, %13, %cst_12 {dimension_numbers = #tpu.dot_dimension_numbers<[1], [0], [0], [1], [0, 0, 1, 1], [], []>} : vector<64x4xf32>, vector<4x256xf32>, vector<64x256xf32> -> vector<64x256xf32>
    %15 = vector.broadcast %1 : vector<64x1xf32> to vector<64x256xf32>
    %16 = arith.addf %14, %15 : vector<64x256xf32>
    %cst_13 = arith.constant 0.000000e+00 : f32
    %17 = vector.broadcast %cst_13 : f32 to vector<64x256xf32>
    %18 = arith.maximumf %16, %17 : vector<64x256xf32>
    %c1_14 = arith.constant 1 : index
    %c0_15 = arith.constant 0 : index
    %c0_16 = arith.constant 0 : index
    %19 = vector.load %arg4[%c1_14, %c0_15, %c0_16] : memref<2x64x256xf32, #tpu.memory_space<vmem>>, vector<1x64x256xf32>
    %20 = vector.shape_cast %19 : vector<1x64x256xf32> to vector<64x256xf32>
    %21 = vector.shape_cast %18 : vector<64x256xf32> to vector<1x64x256xf32>
    tpu.vector_store %arg4[%c1_14, %c0_15, %c0_16], %21 {strides = array<i32>} : memref<2x64x256xf32, #tpu.memory_space<vmem>>, vector<1x64x256xf32>,
    return
  }
  func.func @transform_0(%arg0: i32) -> (i32, i32, i32) {
    %c0_i32 = arith.constant 0 : i32
    %c0_i32_0 = arith.constant 0 : i32
    %c0_i32_1 = arith.constant 0 : i32
    return %c0_i32, %c0_i32_0, %arg0 : i32, i32, i32
  }
  func.func @transform_1(%arg0: i32) -> (i32, i32) {
    %c0_i32 = arith.constant 0 : i32
    %c0_i32_0 = arith.constant 0 : i32
    %c0_i32_1 = arith.constant 0 : i32
    return %c0_i32, %c0_i32_0 : i32, i32
  }
  func.func @transform_2(%arg0: i32) -> (i32, i32) {
    %c0_i32 = arith.constant 0 : i32
    %c0_i32_0 = arith.constant 0 : i32
    %c0_i32_1 = arith.constant 0 : i32
    return %c0_i32, %c0_i32_0 : i32, i32
  }
  func.func @transform_3(%arg0: i32) -> (i32, i32, i32) {
    %c0_i32 = arith.constant 0 : i32
    %c0_i32_0 = arith.constant 0 : i32
    %c0_i32_1 = arith.constant 0 : i32
    return %c0_i32, %c0_i32_0, %arg0 : i32, i32, i32
  }
}

</mosaic_0001>

<llo_original>
// kernel: non_cnn_forward.1
$region0: #{non_cnn_forward.1}
  #allocation0 [shape = 'u32[]', space=smem, size = 0x4, offset = 0x4, fixed_abs, tag = 'smem constant byte address 0x4 - core index']
  #allocation1 [shape = 'u32[144,128]{1,0:T(1,128)}', space=vmem, size = 0x12000, scoped, tag = 'internal scratch']
  %s0 = inlined_call_operand.vmem [shape: f32[2,4,512], index: 0, kind: input, shape index: {}]
  %s1 = inlined_call_operand.vmem [shape: f32[64,4], index: 1, kind: input, shape index: {}]
  %s2 = inlined_call_operand.vmem [shape: f32[64,1], index: 2, kind: input, shape index: {}]
  %s3 = inlined_call_operand.hbm [shape: f32[2,64,512], index: 3, kind: output, shape index: {}]
  %s4 = sld [smem:[#allocation0]]
  $region83: #{non_cnn_forward.1} parent=0
    _
  %s6 = ssub.s32 1, %s4
  %s7 = scalar_select 0, %s6, %s4
  $region1: #{non_cnn_forward.1} parent=0
    #allocation2 [shape = 'u8[16384]{0}', space=vmem, size = 0x4000, scoped, tag = 'input window, operand 0']
    #allocation3 [shape = 'u8[262144]{0}', space=vmem, size = 0x40000, scoped, tag = 'output window, operand 0']
    #allocation4 [shape = 's32[2]{0}', space=sflag, size = 0x8, scoped, tag = 'scoped memory for non_cnn_forward.1']
    %8 = vsyncpa [#allocation4], 0
    %s9 = scalar_lea.sflag [#allocation4], 1
    %10 = vsyncpa %s9, 0
    loop: start=0, step=1, limit=4
    $region2: #{non_cnn_forward.1} parent=1 // loop_pre_header
      _
    $region3: #{non_cnn_forward.1} parent=1 // loop_header
      %s12 = sphi 0, %s16
      %p13 = scmp.ge.s32.totalorder %s12, 4
      %s22 = sphi 0, %s24
      %s25 = sphi 0, %s22
      %s26 = sphi 0, %s25
      %s42 = sphi 0, %s26
      %s46 = sphi 0, %s46
      %s48 = sphi 0, %s46
      %s49 = sphi 0, %s48
      %s63 = sphi 0, %s49
      %s67 = sphi 0, %s67
      %s69 = sphi 0, %s67
      %s70 = sphi 0, %s69
      %s84 = sphi 0, %s70
      %s90 = sphi 0, %s92
      %s93 = sphi 0, %s90
      %s94 = sphi 0, %s93
      %s110 = sphi 0, %s94
    $region4: #{non_cnn_forward.1} parent=1 // loop_header_branch
      %15 = sbr.rel (%p13) target = $region8
    $region5: #{non_cnn_forward.1} parent=1 // loop_body
      %s17 = ssub.s32 %s12, 1
      %s18 = ssub.s32 %s12, 2
      %s19 = sadd.s32 %s12, 1
      %s20 = ssub.s32 %s12, %s19
      %p21 = scmp.eq.s32.totalorder %s20, 0
      %s23 = sadd.s32 %s22, 1
      %s24 = scalar_select %p21, %s22, %s23
      %p27 = pneg %p21
      %p28 = scmp.eq.s32.totalorder %s12, 1
      %p29 = por %p27, %p28
      %p30 = scmp.ne.s32.totalorder %s22, %s25
      %p31 = scmp.eq.s32.totalorder %s12, 0
      %p32 = por %p30, %p31
      %p33 = scmp.ne.s32.totalorder %s22, %s25
      %p34 = scmp.eq.s32.totalorder %s17, 1
      %p35 = por %p33, %p34
      %p36 = scmp.ne.s32.totalorder %s25, %s26
      %p37 = scmp.eq.s32.totalorder %s17, 0
      %p38 = por %p36, %p37
      %p39 = scmp.ne.s32.totalorder %s25, %s26
      %p40 = scmp.eq.s32.totalorder %s18, 1
      %p41 = por %p39, %p40
      %p43 = scmp.ne.s32.totalorder %s26, %s42
      %p44 = scmp.eq.s32.totalorder %s18, 0
      %p45 = por %p43, %p44
      %s47 = sadd.s32 %s46, 1
      %p50 = scmp.eq.s32.totalorder %s12, 1
      %p51 = scmp.ne.s32.totalorder %s46, %s48
      %p52 = scmp.eq.s32.totalorder %s12, 0
      %p53 = por %p51, %p52
      %p54 = scmp.ne.s32.totalorder %s46, %s48
      %p55 = scmp.eq.s32.totalorder %s17, 1
      %p56 = por %p54, %p55
      %p57 = scmp.ne.s32.totalorder %s48, %s49
      %p58 = scmp.eq.s32.totalorder %s17, 0
      %p59 = por %p57, %p58
      %p60 = scmp.ne.s32.totalorder %s48, %s49
      %p61 = scmp.eq.s32.totalorder %s18, 1
      %p62 = por %p60, %p61
      %p64 = scmp.ne.s32.totalorder %s49, %s63
      %p65 = scmp.eq.s32.totalorder %s18, 0
      %p66 = por %p64, %p65
      %s68 = sadd.s32 %s67, 1
      %p71 = scmp.eq.s32.totalorder %s12, 1
      %p72 = scmp.ne.s32.totalorder %s67, %s69
      %p73 = scmp.eq.s32.totalorder %s12, 0
      %p74 = por %p72, %p73
      %p75 = scmp.ne.s32.totalorder %s67, %s69
      %p76 = scmp.eq.s32.totalorder %s17, 1
      %p77 = por %p75, %p76
      %p78 = scmp.ne.s32.totalorder %s69, %s70
      %p79 = scmp.eq.s32.totalorder %s17, 0
      %p80 = por %p78, %p79
      %p81 = scmp.ne.s32.totalorder %s69, %s70
      %p82 = scmp.eq.s32.totalorder %s18, 1
      %p83 = por %p81, %p82
      %p85 = scmp.ne.s32.totalorder %s70, %s84
      %p86 = scmp.eq.s32.totalorder %s18, 0
      %p87 = por %p85, %p86
      %s88 = ssub.s32 %s12, %s19
      %p89 = scmp.eq.s32.totalorder %s88, 0
      %s91 = sadd.s32 %s90, 1
      %s92 = scalar_select %p89, %s90, %s91
      %p95 = pneg %p89
      %p96 = scmp.eq.s32.totalorder %s12, 1
      %p97 = por %p95, %p96
      %p98 = scmp.ne.s32.totalorder %s90, %s93
      %p99 = scmp.eq.s32.totalorder %s12, 0
      %p100 = por %p98, %p99
      %p101 = scmp.ne.s32.totalorder %s90, %s93
      %p102 = scmp.eq.s32.totalorder %s17, 1
      %p103 = por %p101, %p102
      %p104 = scmp.ne.s32.totalorder %s93, %s94
      %p105 = scmp.eq.s32.totalorder %s17, 0
      %p106 = por %p104, %p105
      %p107 = scmp.ne.s32.totalorder %s93, %s94
      %p108 = scmp.eq.s32.totalorder %s18, 1
      %p109 = por %p107, %p108
      %p111 = scmp.ne.s32.totalorder %s94, %s110
      %p112 = scmp.eq.s32.totalorder %s18, 0
      %p113 = por %p111, %p112
      %p114 = scmp.le.s32.totalorder 1, %s12
      %p115 = scmp.lt.s32.totalorder %s12, 3
      %p116 = pnand %p114, %p115
      %p117 = pneg %p116
      // Predicated region
      $region9: #{non_cnn_forward.1} parent=5 // pred_check
        _
      $region10: #{non_cnn_forward.1} parent=5 // pred_check_branch
        %119 = sbr.rel (%p116) target = $region12
      $region11: #{non_cnn_forward.1} parent=5 // pred_region
        %s120 = ssub.s32 %s12, 1
        // Predicated region
        $region13: #{non_cnn_forward.1} parent=11 // pred_check
          %p121 = pneg %p59
        $region14: #{non_cnn_forward.1} parent=11 // pred_check_branch
          %123 = sbr.rel (%p121) target = $region16
        $region15: #{non_cnn_forward.1} parent=11 // pred_region
          _
        $region16: #{non_cnn_forward.1} parent=11 // pred_fallthru
          _
        // Predicated region
        $region17: #{non_cnn_forward.1} parent=11 // pred_check
          %p124 = pneg %p80
        $region18: #{non_cnn_forward.1} parent=11 // pred_check_branch
          %126 = sbr.rel (%p124) target = $region20
        $region19: #{non_cnn_forward.1} parent=11 // pred_region
          _
        $region20: #{non_cnn_forward.1} parent=11 // pred_fallthru
          _
      $region12: #{non_cnn_forward.1} parent=5 // pred_fallthru
        _
      %p127 = scmp.lt.s32.totalorder %s12, 2
      // Predicated region
      $region21: #{non_cnn_forward.1} parent=5 // pred_check
        %p128 = pneg %p127
      $region22: #{non_cnn_forward.1} parent=5 // pred_check_branch
        %130 = sbr.rel (%p128) target = $region24
      $region23: #{non_cnn_forward.1} parent=5 // pred_region
        // Predicated region
        $region25: #{non_cnn_forward.1} parent=23 // pred_check
          %p131 = pneg %p32
        $region26: #{non_cnn_forward.1} parent=23 // pred_check_branch
          %133 = sbr.rel (%p131) target = $region28
        $region27: #{non_cnn_forward.1} parent=23 // pred_region
          %s134 = sand.u32 %s22, 1
          %s135 = sand.u32 %s22, 1
          %s136 = smul.addr %s135, 16
          %s137 = scalar_lea.vmem [#allocation2], %s136
          %s138 = smul.u32 2, %s12
          %s139 = smul.addr %s138, 4
          %s140 = scalar_lea.vmem %s0, %s139
          // Predicated region
          $region29: #{non_cnn_forward.1} parent=27 // pred_check
            _
          $region30: #{non_cnn_forward.1} parent=27 // pred_check_branch
            %142 = sbr.rel (0) target = $region32
          $region31: #{non_cnn_forward.1} parent=27 // pred_region
            // Predicated region
            $region33: #{non_cnn_forward.1} parent=31 // pred_check
              _
            $region34: #{non_cnn_forward.1} parent=31 // pred_check_branch
              %144 = sbr.rel (0) target = $region36
            $region35: #{non_cnn_forward.1} parent=31 // pred_region
              // Predicated region
              $region48: #{non_cnn_forward.1} parent=35 // pred_check
                _
              $region49: #{non_cnn_forward.1} parent=35 // pred_check_branch
                %162 = sbr.rel (0) target = $region51
              $region50: #{non_cnn_forward.1} parent=35 // pred_region
                loop: start=0, step=1, limit=1
                $region52: #{non_cnn_forward.1} parent=50 // loop_pre_header
                  _
                $region53: #{non_cnn_forward.1} parent=50 // loop_header
                  %s164 = sphi 0, %s168
                  %p165 = scmp.ge.s32.totalorder %s164, 1
                  %s169 = sphi %s140, %s140
                  %s170 = sphi %s137, %s137
                $region54: #{non_cnn_forward.1} parent=50 // loop_header_branch
                  %167 = sbr.rel (%p165) target = $region58
                $region55: #{non_cnn_forward.1} parent=50 // loop_body
                  %v171 = vld [vmem:[%s169] sm:$0xff]
                  %172 = vst [vmem:[%s170] sm:$0xff] %v171
                  %v173 = vld [vmem:[%s169 + $0x10] sm:$0xff]
                  %174 = vst [vmem:[%s170 + $0x8] sm:$0xff] %v173
                $region56: #{non_cnn_forward.1} parent=50 // loop_footer
                  %s168 = sadd.s32 1, %s164
                $region57: #{non_cnn_forward.1} parent=50 // loop_footer_branch
                  %163 = sbr.rel target = $region53
                $region58: #{non_cnn_forward.1} parent=50 // loop_exit
                  _
              $region51: #{non_cnn_forward.1} parent=35 // pred_fallthru
                _
              // Predicated region
              $region59: #{non_cnn_forward.1} parent=35 // pred_check
                _
              $region60: #{non_cnn_forward.1} parent=35 // pred_check_branch
                %176 = sbr.rel target = $region62
              $region61: #{non_cnn_forward.1} parent=35 // pred_region
                _
              $region62: #{non_cnn_forward.1} parent=35 // pred_fallthru
                _
            $region36: #{non_cnn_forward.1} parent=31 // pred_fallthru
              _
            // Predicated region
            $region37: #{non_cnn_forward.1} parent=31 // pred_check
              _
            $region38: #{non_cnn_forward.1} parent=31 // pred_check_branch
              %146 = sbr.rel target = $region40
            $region39: #{non_cnn_forward.1} parent=31 // pred_region
              %s148 = ssub.s32 256, 1
              loop: start=0, step=1, limit=1
              $region41: #{non_cnn_forward.1} parent=39 // loop_pre_header
                _
              $region42: #{non_cnn_forward.1} parent=39 // loop_header
                %s150 = sphi 0, %s154
                %p151 = scmp.ge.s32.totalorder %s150, 1
                %s155 = sphi %s140, %s140
                %s156 = sphi %s137, %s137
              $region43: #{non_cnn_forward.1} parent=39 // loop_header_branch
                %153 = sbr.rel (%p151) target = $region47
              $region44: #{non_cnn_forward.1} parent=39 // loop_body
                %v157 = vld [vmem:[%s155] sm:%s148]
                %158 = vst [vmem:[%s156] sm:%s148] %v157
                %v159 = vld [vmem:[%s155 + $0x10] sm:%s148]
                %160 = vst [vmem:[%s156 + $0x8] sm:%s148] %v159
              $region45: #{non_cnn_forward.1} parent=39 // loop_footer
                %s154 = sadd.s32 1, %s150
              $region46: #{non_cnn_forward.1} parent=39 // loop_footer_branch
                %149 = sbr.rel target = $region42
              $region47: #{non_cnn_forward.1} parent=39 // loop_exit
                _
            $region40: #{non_cnn_forward.1} parent=31 // pred_fallthru
              _
          $region32: #{non_cnn_forward.1} parent=27 // pred_fallthru
            _
          %177 = vnop
        $region28: #{non_cnn_forward.1} parent=23 // pred_fallthru
          _
      $region24: #{non_cnn_forward.1} parent=5 // pred_fallthru
        _
      %p178 = scmp.le.s32.totalorder 1, %s12
      %p179 = scmp.lt.s32.totalorder %s12, 3
      %p180 = pnand %p178, %p179
      %p181 = pneg %p180
      // Predicated region
      $region63: #{non_cnn_forward.1} parent=5 // pred_check
        _
      $region64: #{non_cnn_forward.1} parent=5 // pred_check_branch
        %183 = sbr.rel (%p180) target = $region66
      $region65: #{non_cnn_forward.1} parent=5 // pred_region
        %s184 = ssub.s32 %s12, 1
        %s185 = sand.u32 %s25, 1
        %s186 = sand.u32 %s25, 1
        %s187 = smul.addr %s186, 16
        %s188 = scalar_lea.vmem [#allocation2], %s187
        // Predicated region
        $region67: #{non_cnn_forward.1} parent=65 // pred_check
          %p189 = pneg %p38
        $region68: #{non_cnn_forward.1} parent=65 // pred_check_branch
          %191 = sbr.rel (%p189) target = $region70
        $region69: #{non_cnn_forward.1} parent=65 // pred_region
          _
        $region70: #{non_cnn_forward.1} parent=65 // pred_fallthru
          _
        %s192 = sand.u32 %s25, 1
        %s193 = sand.u32 %s25, 1
        %s194 = smul.addr %s193, 16
        %s195 = scalar_lea.vmem [#allocation2], %s194
        %p196 = pneg %p38
        %p197 = pneg %p35
        %p198 = pneg %p59
        %p199 = pneg %p56
        %p200 = pneg %p80
        %p201 = pneg %p77
        %p202 = pneg %p106
        %p203 = pneg %p103
        %s204 = sand.u32 %s93, 1
        %s205 = scalar_lea.sflag [#allocation4], %s204
        %s206 = sand.u32 %s93, 1
        %s207 = smul.addr %s206, 256
        %s208 = scalar_lea.vmem [#allocation3], %s207
        %s209 = smul.u32 2, %s17
        %s210 = smul.u32 2, %s17
        %v211 = vld [vmem:[%s1] sm:$0xff]
        %v212 = vld [vmem:[%s1 + $0x8] sm:$0xff]
        %v213 = vld [vmem:[%s1 + $0x10] sm:$0xff]
        %v214 = vld [vmem:[%s1 + $0x18] sm:$0xff]
        %v215 = vld [vmem:[%s1 + $0x20] sm:$0xff]
        %v216 = vld [vmem:[%s1 + $0x28] sm:$0xff]
        %v217 = vld [vmem:[%s1 + $0x30] sm:$0xff]
        %v218 = vld [vmem:[%s1 + $0x38] sm:$0xff]
        %v219 = vld [vmem:[%s2] sm:$0xff]
        %v220 = vld [vmem:[%s2 + $0x8] sm:$0xff]
        %v221 = vld [vmem:[%s2 + $0x10] sm:$0xff]
        %v222 = vld [vmem:[%s2 + $0x18] sm:$0xff]
        %v223 = vld [vmem:[%s2 + $0x20] sm:$0xff]
        %v224 = vld [vmem:[%s2 + $0x28] sm:$0xff]
        %v225 = vld [vmem:[%s2 + $0x30] sm:$0xff]
        %v226 = vld [vmem:[%s2 + $0x38] sm:$0xff]
        %v227 = vld [vmem:[%s188] sm:$0xff]
        %229 = vset.pattern.permute.xlu0 0
        %230 = vperm.xlu0 %229, %v219
        %v231 = vpop.permute.xlu0 %230
        %234 = vset.pattern.permute.xlu0 0
        %235 = vperm.xlu0 %234, %v220
        %v236 = vpop.permute.xlu0 %235
        %239 = vset.pattern.permute.xlu0 0
        %240 = vperm.xlu0 %239, %v221
        %v241 = vpop.permute.xlu0 %240
        %244 = vset.pattern.permute.xlu0 0
        %245 = vperm.xlu0 %244, %v222
        %v246 = vpop.permute.xlu0 %245
        %249 = vset.pattern.permute.xlu0 0
        %250 = vperm.xlu0 %249, %v223
        %v251 = vpop.permute.xlu0 %250
        %254 = vset.pattern.permute.xlu0 0
        %255 = vperm.xlu0 %254, %v224
        %v256 = vpop.permute.xlu0 %255
        %259 = vset.pattern.permute.xlu0 0
        %260 = vperm.xlu0 %259, %v225
        %v261 = vpop.permute.xlu0 %260
        %264 = vset.pattern.permute.xlu0 0
        %265 = vperm.xlu0 %264, %v226
        %v266 = vpop.permute.xlu0 %265
        %v269 = vcombine.high %v227, %v227
        %vm270 = vcmask 31744
        %v272 = vsel %vm270, %v211, 0
        %v275 = vsel %vm270, %v212, 0
        %v278 = vsel %vm270, %v213, 0
        %v281 = vsel %vm270, %v214, 0
        %v284 = vsel %vm270, %v215, 0
        %v287 = vsel %vm270, %v216, 0
        %v290 = vsel %vm270, %v217, 0
        %v293 = vsel %vm270, %v218, 0
        %vm295 = vcmask 1043456
        %v296 = vsel %vm295, %v227, 0
        %v298 = vsel %vm295, %v269, 0
        %300 = vmatprep.subr.mxu0 0.0
        %301 = vmatpush1.msra.mxu0 0.0
        %302 = vmatprep.subr.mxu0 0.0
        %303 = vmatpush1.msra.mxu0 0.0
        %304 = vmatprep.subr.mxu0 0.0
        %305 = vmatpush1.msra.mxu0 0.0
        %306 = vmatprep.subr.mxu0 0.0
        %307 = vmatpush1.msra.mxu0 0.0
        %308 = vmatprep.subr.mxu0 0.0
        %309 = vmatpush1.msra.mxu0 0.0
        %310 = vmatprep.subr.mxu0 0.0
        %311 = vmatpush1.msra.mxu0 0.0
        %312 = vmatprep.subr.mxu0 0.0
        %313 = vmatpush1.msra.mxu0 0.0
        %314 = vmatprep.subr.mxu0 0.0
        %315 = vmatpush1.msra.mxu0 0.0
        %316 = vmatprep.subr.mxu0 0.0
        %317 = vmatpush1.msra.mxu0 0.0
        %318 = vmatprep.subr.mxu0 0.0
        %319 = vmatpush1.msra.mxu0 0.0
        %320 = vmatprep.subr.mxu0 0.0
        %321 = vmatpush1.msra.mxu0 0.0
        %322 = vmatprep.subr.mxu0 0.0
        %323 = vmatpush1.msra.mxu0 0.0
        %324 = vmatprep.subr.mxu0 0.0
        %325 = vmatpush1.msra.mxu0 0.0
        %326 = vmatprep.subr.mxu0 0.0
        %327 = vmatpush1.msra.mxu0 0.0
        %328 = vmatprep.subr.mxu0 0.0
        %329 = vmatpush1.msra.mxu0 0.0
        %330 = vmatprep.subr.mxu0 %v298
        %331 = vmatpush1.msra.mxu0 %v296
        %332 = vmatprep.subr.mxu0 0.0
        %333 = vmatpush2.msra.mxu0 0.0
        %334 = vmatprep.subr.mxu0 0.0
        %335 = vmatpush2.msra.mxu0 0.0
        %336 = vmatprep.subr.mxu0 0.0
        %337 = vmatpush2.msra.mxu0 0.0
        %338 = vmatprep.subr.mxu0 0.0
        %339 = vmatpush2.msra.mxu0 0.0
        %340 = vmatprep.subr.mxu0 0.0
        %341 = vmatpush2.msra.mxu0 0.0
        %342 = vmatprep.subr.mxu0 0.0
        %343 = vmatpush2.msra.mxu0 0.0
        %344 = vmatprep.subr.mxu0 0.0
        %345 = vmatpush2.msra.mxu0 0.0
        %346 = vmatprep.subr.mxu0 0.0
        %347 = vmatpush2.msra.mxu0 0.0
        %348 = vmatprep.subr.mxu0 0.0
        %349 = vmatpush2.msra.mxu0 0.0
        %350 = vmatprep.subr.mxu0 0.0
        %351 = vmatpush2.msra.mxu0 0.0
        %352 = vmatprep.subr.mxu0 0.0
        %353 = vmatpush2.msra.mxu0 0.0
        %354 = vmatprep.subr.mxu0 0.0
        %355 = vmatpush2.msra.mxu0 0.0
        %356 = vmatprep.subr.mxu0 0.0
        %357 = vmatpush2.msra.mxu0 0.0
        %358 = vmatprep.subr.mxu0 0.0
        %359 = vmatpush2.msra.mxu0 0.0
        %360 = vmatprep.subr.mxu0 0.0
        %361 = vmatpush2.msra.mxu0 0.0
        %362 = vmatprep.subr.mxu0 0.0
        %363 = vmatpush2.msra.mxu0 0.0
        %364 = vmatprep.mubr.f32.mxu0 0.0
        %365 = vmatmul.mubr.f32.gmra.mxu0 %v272
        %v366 = vpop.f32.mrf.mxu0
        %v367 = vadd.f32 %v231, %v366
        %v368 = vpop.f32.mrf.mxu0
        %v369 = vadd.f32 %v231, %v368
        %370 = vmatprep.mubr.f32.mxu0 0.0
        %371 = vmatmul.mubr.f32.gmra.mxu0 %v275
        %v372 = vpop.f32.mrf.mxu0
        %v373 = vadd.f32 %v236, %v372
        %v374 = vpop.f32.mrf.mxu0
        %v375 = vadd.f32 %v236, %v374
        %376 = vmatprep.mubr.f32.mxu0 0.0
        %377 = vmatmul.mubr.f32.gmra.mxu0 %v278
        %v378 = vpop.f32.mrf.mxu0
        %v379 = vadd.f32 %v241, %v378
        %v380 = vpop.f32.mrf.mxu0
        %v381 = vadd.f32 %v241, %v380
        %382 = vmatprep.mubr.f32.mxu0 0.0
        %383 = vmatmul.mubr.f32.gmra.mxu0 %v281
        %v384 = vpop.f32.mrf.mxu0
        %v385 = vadd.f32 %v246, %v384
        %v386 = vpop.f32.mrf.mxu0
        %v387 = vadd.f32 %v246, %v386
        %388 = vmatprep.mubr.f32.mxu0 0.0
        %389 = vmatmul.mubr.f32.gmra.mxu0 %v284
        %v390 = vpop.f32.mrf.mxu0
        %v391 = vadd.f32 %v251, %v390
        %v392 = vpop.f32.mrf.mxu0
        %v393 = vadd.f32 %v251, %v392
        %394 = vmatprep.mubr.f32.mxu0 0.0
        %395 = vmatmul.mubr.f32.gmra.mxu0 %v287
        %v396 = vpop.f32.mrf.mxu0
        %v397 = vadd.f32 %v256, %v396
        %v398 = vpop.f32.mrf.mxu0
        %v399 = vadd.f32 %v256, %v398
        %400 = vmatprep.mubr.f32.mxu0 0.0
        %401 = vmatmul.mubr.f32.gmra.mxu0 %v290
        %v402 = vpop.f32.mrf.mxu0
        %v403 = vadd.f32 %v261, %v402
        %v404 = vpop.f32.mrf.mxu0
        %v405 = vadd.f32 %v261, %v404
        %406 = vmatprep.mubr.f32.mxu0 0.0
        %407 = vmatmul.mubr.f32.gmra.mxu0 %v293
        %v408 = vpop.f32.mrf.mxu0
        %v409 = vadd.f32 %v266, %v408
        %v410 = vpop.f32.mrf.mxu0
        %v411 = vadd.f32 %v266, %v410
        %412 = vdwg.mxu0
        %v413 = vmax.f32 %v367, 0.0
        %v414 = vmax.f32 %v369, 0.0
        %v415 = vmax.f32 %v373, 0.0
        %v416 = vmax.f32 %v375, 0.0
        %v417 = vmax.f32 %v379, 0.0
        %v418 = vmax.f32 %v381, 0.0
        %v419 = vmax.f32 %v385, 0.0
        %v420 = vmax.f32 %v387, 0.0
        %v421 = vmax.f32 %v391, 0.0
        %v422 = vmax.f32 %v393, 0.0
        %v423 = vmax.f32 %v397, 0.0
        %v424 = vmax.f32 %v399, 0.0
        %v425 = vmax.f32 %v403, 0.0
        %v426 = vmax.f32 %v405, 0.0
        %v427 = vmax.f32 %v409, 0.0
        %v428 = vmax.f32 %v411, 0.0
        %429 = vst [vmem:[%s208] sm:$0xff] %v413
        %430 = vst [vmem:[%s208 + $0x8] sm:$0xff] %v414
        %431 = vst [vmem:[%s208 + $0x10] sm:$0xff] %v415
        %432 = vst [vmem:[%s208 + $0x18] sm:$0xff] %v416
        %433 = vst [vmem:[%s208 + $0x20] sm:$0xff] %v417
        %434 = vst [vmem:[%s208 + $0x28] sm:$0xff] %v418
        %435 = vst [vmem:[%s208 + $0x30] sm:$0xff] %v419
        %436 = vst [vmem:[%s208 + $0x38] sm:$0xff] %v420
        %437 = vst [vmem:[%s208 + $0x40] sm:$0xff] %v421
        %438 = vst [vmem:[%s208 + $0x48] sm:$0xff] %v422
        %439 = vst [vmem:[%s208 + $0x50] sm:$0xff] %v423
        %440 = vst [vmem:[%s208 + $0x58] sm:$0xff] %v424
        %441 = vst [vmem:[%s208 + $0x60] sm:$0xff] %v425
        %442 = vst [vmem:[%s208 + $0x68] sm:$0xff] %v426
        %443 = vst [vmem:[%s208 + $0x70] sm:$0xff] %v427
        %444 = vst [vmem:[%s208 + $0x78] sm:$0xff] %v428
        %s445 = scalar_lea.vmem %s188, 8 [#allocation2]
        %v446 = vld [vmem:[%s445] sm:$0xff]
        %v448 = vcombine.high %v446, %v446
        %v449 = vsel %vm295, %v446, 0
        %v451 = vsel %vm295, %v448, 0
        %453 = vmatprep.subr.mxu0 0.0
        %454 = vmatpush1.msra.mxu0 0.0
        %455 = vmatprep.subr.mxu0 0.0
        %456 = vmatpush1.msra.mxu0 0.0
        %457 = vmatprep.subr.mxu0 0.0
        %458 = vmatpush1.msra.mxu0 0.0
        %459 = vmatprep.subr.mxu0 0.0
        %460 = vmatpush1.msra.mxu0 0.0
        %461 = vmatprep.subr.mxu0 0.0
        %462 = vmatpush1.msra.mxu0 0.0
        %463 = vmatprep.subr.mxu0 0.0
        %464 = vmatpush1.msra.mxu0 0.0
        %465 = vmatprep.subr.mxu0 0.0
        %466 = vmatpush1.msra.mxu0 0.0
        %467 = vmatprep.subr.mxu0 0.0
        %468 = vmatpush1.msra.mxu0 0.0
        %469 = vmatprep.subr.mxu0 0.0
        %470 = vmatpush1.msra.mxu0 0.0
        %471 = vmatprep.subr.mxu0 0.0
        %472 = vmatpush1.msra.mxu0 0.0
        %473 = vmatprep.subr.mxu0 0.0
        %474 = vmatpush1.msra.mxu0 0.0
        %475 = vmatprep.subr.mxu0 0.0
        %476 = vmatpush1.msra.mxu0 0.0
        %477 = vmatprep.subr.mxu0 0.0
        %478 = vmatpush1.msra.mxu0 0.0
        %479 = vmatprep.subr.mxu0 0.0
        %480 = vmatpush1.msra.mxu0 0.0
        %481 = vmatprep.subr.mxu0 0.0
        %482 = vmatpush1.msra.mxu0 0.0
        %483 = vmatprep.subr.mxu0 %v451
        %484 = vmatpush1.msra.mxu0 %v449
        %485 = vmatprep.subr.mxu0 0.0
        %486 = vmatpush2.msra.mxu0 0.0
        %487 = vmatprep.subr.mxu0 0.0
        %488 = vmatpush2.msra.mxu0 0.0
        %489 = vmatprep.subr.mxu0 0.0
        %490 = vmatpush2.msra.mxu0 0.0
        %491 = vmatprep.subr.mxu0 0.0
        %492 = vmatpush2.msra.mxu0 0.0
        %493 = vmatprep.subr.mxu0 0.0
        %494 = vmatpush2.msra.mxu0 0.0
        %495 = vmatprep.subr.mxu0 0.0
        %496 = vmatpush2.msra.mxu0 0.0
        %497 = vmatprep.subr.mxu0 0.0
        %498 = vmatpush2.msra.mxu0 0.0
        %499 = vmatprep.subr.mxu0 0.0
        %500 = vmatpush2.msra.mxu0 0.0
        %501 = vmatprep.subr.mxu0 0.0
        %502 = vmatpush2.msra.mxu0 0.0
        %503 = vmatprep.subr.mxu0 0.0
        %504 = vmatpush2.msra.mxu0 0.0
        %505 = vmatprep.subr.mxu0 0.0
        %506 = vmatpush2.msra.mxu0 0.0
        %507 = vmatprep.subr.mxu0 0.0
        %508 = vmatpush2.msra.mxu0 0.0
        %509 = vmatprep.subr.mxu0 0.0
        %510 = vmatpush2.msra.mxu0 0.0
        %511 = vmatprep.subr.mxu0 0.0
        %512 = vmatpush2.msra.mxu0 0.0
        %513 = vmatprep.subr.mxu0 0.0
        %514 = vmatpush2.msra.mxu0 0.0
        %515 = vmatprep.subr.mxu0 0.0
        %516 = vmatpush2.msra.mxu0 0.0
        %517 = vmatprep.mubr.f32.mxu0 0.0
        %518 = vmatmul.mubr.f32.gmra.mxu0 %v272
        %v519 = vpop.f32.mrf.mxu0
        %v520 = vadd.f32 %v231, %v519
        %v521 = vpop.f32.mrf.mxu0
        %v522 = vadd.f32 %v231, %v521
        %523 = vmatprep.mubr.f32.mxu0 0.0
        %524 = vmatmul.mubr.f32.gmra.mxu0 %v275
        %v525 = vpop.f32.mrf.mxu0
        %v526 = vadd.f32 %v236, %v525
        %v527 = vpop.f32.mrf.mxu0
        %v528 = vadd.f32 %v236, %v527
        %529 = vmatprep.mubr.f32.mxu0 0.0
        %530 = vmatmul.mubr.f32.gmra.mxu0 %v278
        %v531 = vpop.f32.mrf.mxu0
        %v532 = vadd.f32 %v241, %v531
        %v533 = vpop.f32.mrf.mxu0
        %v534 = vadd.f32 %v241, %v533
        %535 = vmatprep.mubr.f32.mxu0 0.0
        %536 = vmatmul.mubr.f32.gmra.mxu0 %v281
        %v537 = vpop.f32.mrf.mxu0
        %v538 = vadd.f32 %v246, %v537
        %v539 = vpop.f32.mrf.mxu0
        %v540 = vadd.f32 %v246, %v539
        %541 = vmatprep.mubr.f32.mxu0 0.0
        %542 = vmatmul.mubr.f32.gmra.mxu0 %v284
        %v543 = vpop.f32.mrf.mxu0
        %v544 = vadd.f32 %v251, %v543
        %v545 = vpop.f32.mrf.mxu0
        %v546 = vadd.f32 %v251, %v545
        %547 = vmatprep.mubr.f32.mxu0 0.0
        %548 = vmatmul.mubr.f32.gmra.mxu0 %v287
        %v549 = vpop.f32.mrf.mxu0
        %v550 = vadd.f32 %v256, %v549
        %v551 = vpop.f32.mrf.mxu0
        %v552 = vadd.f32 %v256, %v551
        %553 = vmatprep.mubr.f32.mxu0 0.0
        %554 = vmatmul.mubr.f32.gmra.mxu0 %v290
        %v555 = vpop.f32.mrf.mxu0
        %v556 = vadd.f32 %v261, %v555
        %v557 = vpop.f32.mrf.mxu0
        %v558 = vadd.f32 %v261, %v557
        %559 = vmatprep.mubr.f32.mxu0 0.0
        %560 = vmatmul.mubr.f32.gmra.mxu0 %v293
        %v561 = vpop.f32.mrf.mxu0
        %v562 = vadd.f32 %v266, %v561
        %v563 = vpop.f32.mrf.mxu0
        %v564 = vadd.f32 %v266, %v563
        %565 = vdwg.mxu0
        %v566 = vmax.f32 %v520, 0.0
        %v567 = vmax.f32 %v522, 0.0
        %v568 = vmax.f32 %v526, 0.0
        %v569 = vmax.f32 %v528, 0.0
        %v570 = vmax.f32 %v532, 0.0
        %v571 = vmax.f32 %v534, 0.0
        %v572 = vmax.f32 %v538, 0.0
        %v573 = vmax.f32 %v540, 0.0
        %v574 = vmax.f32 %v544, 0.0
        %v575 = vmax.f32 %v546, 0.0
        %v576 = vmax.f32 %v550, 0.0
        %v577 = vmax.f32 %v552, 0.0
        %v578 = vmax.f32 %v556, 0.0
        %v579 = vmax.f32 %v558, 0.0
        %v580 = vmax.f32 %v562, 0.0
        %v581 = vmax.f32 %v564, 0.0
        %s582 = scalar_lea.vmem %s208, 128 [#allocation3]
        %583 = vst [vmem:[%s582] sm:$0xff] %v566
        %584 = vst [vmem:[%s582 + $0x8] sm:$0xff] %v567
        %585 = vst [vmem:[%s582 + $0x10] sm:$0xff] %v568
        %586 = vst [vmem:[%s582 + $0x18] sm:$0xff] %v569
        %587 = vst [vmem:[%s582 + $0x20] sm:$0xff] %v570
        %588 = vst [vmem:[%s582 + $0x28] sm:$0xff] %v571
        %589 = vst [vmem:[%s582 + $0x30] sm:$0xff] %v572
        %590 = vst [vmem:[%s582 + $0x38] sm:$0xff] %v573
        %591 = vst [vmem:[%s582 + $0x40] sm:$0xff] %v574
        %592 = vst [vmem:[%s582 + $0x48] sm:$0xff] %v575
        %593 = vst [vmem:[%s582 + $0x50] sm:$0xff] %v576
        %594 = vst [vmem:[%s582 + $0x58] sm:$0xff] %v577
        %595 = vst [vmem:[%s582 + $0x60] sm:$0xff] %v578
        %596 = vst [vmem:[%s582 + $0x68] sm:$0xff] %v579
        %597 = vst [vmem:[%s582 + $0x70] sm:$0xff] %v580
        %598 = vst [vmem:[%s582 + $0x78] sm:$0xff] %v581
        %s599 = sand.u32 %s93, 1
        %s600 = scalar_lea.sflag [#allocation4], %s599
        %s601 = sand.u32 %s93, 1
        %s602 = smul.addr %s601, 256
        %s603 = scalar_lea.vmem [#allocation3], %s602
        // Predicated region
        $region71: #{non_cnn_forward.1} parent=65 // pred_check
          %p604 = pneg %p103
        $region72: #{non_cnn_forward.1} parent=65 // pred_check_branch
          %606 = sbr.rel (%p604) target = $region74
        $region73: #{non_cnn_forward.1} parent=65 // pred_region
          %s607 = smul.u32 2, %s17
          %s609 = ssub.s32 4096, 4096
          %610 = vsyncadd %s600, %s609
          %s611 = smul.addr %s607, 128
          %s612 = scalar_lea.hbm %s3, %s611
          %s613 = sshll.u32 %s603, 4
          %s614 = int_to_ptr.vmem [resolvable:$true] %s613
          %619 = dma.vmem_to_hbm [thread:$0]  %s614, 4096, %s612, %s600, 256, 512, 16
        $region74: #{non_cnn_forward.1} parent=65 // pred_fallthru
          _
      $region66: #{non_cnn_forward.1} parent=5 // pred_fallthru
        _
      %p620 = scmp.le.s32.totalorder 2, %s12
      // Predicated region
      $region75: #{non_cnn_forward.1} parent=5 // pred_check
        %p621 = pneg %p620
      $region76: #{non_cnn_forward.1} parent=5 // pred_check_branch
        %623 = sbr.rel (%p621) target = $region78
      $region77: #{non_cnn_forward.1} parent=5 // pred_region
        %s624 = ssub.s32 %s12, 2
        // Predicated region
        $region79: #{non_cnn_forward.1} parent=77 // pred_check
          %p625 = pneg %p109
        $region80: #{non_cnn_forward.1} parent=77 // pred_check_branch
          %627 = sbr.rel (%p625) target = $region82
        $region81: #{non_cnn_forward.1} parent=77 // pred_region
          %s628 = sand.u32 %s94, 1
          %s629 = scalar_lea.sflag [#allocation4], %s628
          %s630 = sand.u32 %s94, 1
          %s631 = smul.addr %s630, 256
          %s632 = scalar_lea.vmem [#allocation3], %s631
          %633 = dma.done %s629, 4096
        $region82: #{non_cnn_forward.1} parent=77 // pred_fallthru
          _
      $region78: #{non_cnn_forward.1} parent=5 // pred_fallthru
        _
    $region6: #{non_cnn_forward.1} parent=1 // loop_footer
      %s16 = sadd.s32 1, %s12
    $region7: #{non_cnn_forward.1} parent=1 // loop_footer_branch
      %11 = sbr.rel target = $region3
    $region8: #{non_cnn_forward.1} parent=1 // loop_exit
      _
    %634 = vsyncpa [#allocation4], 1
    %s635 = scalar_lea.sflag [#allocation4], 1
    %636 = vsyncpa %s635, 1

</llo_original>
